<compile_context>
chip_gen: v7x
topology: tpu7x:2x2x1
jax: 0.10.0
libtpu: 0.0.40
codegen_flags: <defaults>
</compile_context>

<pallas_src>
import functools

import jax
import jax.numpy as jnp
from jax.experimental import pallas as pl
from jax.experimental.pallas import tpu as pltpu

_LANE = 128       # TPU vreg lane width
_SUBLANE = 8      # TPU vreg sublane count
_NEG_PAD = -1e30  # bias on padded action lanes -> exp underflows to exactly 0


def _round_up(n, m):
    return ((n + m - 1) // m) * m


def _policy_mlp_kernel(x_ref, w1_ref, b1_ref, w2_ref, b2_ref, w3_ref, b3_ref,
                       out_ref):
    """One batch tile: fused MLP + numerically-stable log_softmax in VMEM."""
    x = x_ref[...]

    h1 = jnp.dot(x, w1_ref[...], preferred_element_type=jnp.float32) + b1_ref[...]
    h1 = jnp.maximum(h1, 0.0)

    h2 = jnp.dot(h1, w2_ref[...], preferred_element_type=jnp.float32) + b2_ref[...]
    h2 = jnp.maximum(h2, 0.0)

    # Lane-dense (TB, 128) logits; padded lanes carry a -1e30 bias.
    logits = jnp.dot(h2, w3_ref[...], preferred_element_type=jnp.float32) + b3_ref[...]

    # Stable log_softmax over the padded last axis: padded lanes give
    # exp(shifted)=0, so the denominator equals the real-lane sum.
    m = jnp.max(logits, axis=-1, keepdims=True)
    shifted = logits - m
    lse = jnp.log(jnp.sum(jnp.exp(shifted), axis=-1, keepdims=True))
    logp = shifted - lse

    # Narrow (masked) store of only the real action lanes: padded lanes never
    # leave VMEM, so HBM output traffic is B*A, not B*128.
    out_ref[...] = logp[:, : out_ref.shape[-1]].astype(out_ref.dtype)


def prepare_params(params):
    """One-time parameter prep — call once at init, NOT per forward.

    Pads the final layer's output dim up to the 128-lane vreg width so the
    in-kernel compute stays lane-dense; padded lanes get a -1e30 bias.
    """
    w3, b3 = params["w3"], params["b3"]
    H, A = w3.shape
    Ap = max(_LANE, _round_up(A, _LANE))
    w3p = jnp.zeros((H, Ap), w3.dtype).at[:, :A].set(w3)
    b3p = jnp.full((1, Ap), _NEG_PAD, b3.dtype).at[:, :A].set(b3)
    prepared = dict(params)
    prepared["w3p"] = w3p
    prepared["b3p"] = b3p
    return prepared


def _choose_batch_tile(B, max_tb):
    """Few, large, (preferably evenly-paired) batch tiles."""
    if B < _SUBLANE:
        return B  # single tiny block; block dim == full array dim is legal
    n_tiles = pl.cdiv(B, max_tb)
    if B >= 2 * _SUBLANE:
        n_tiles = max(n_tiles, 2)
        n_tiles += n_tiles % 2  # even tile count -> balanced v7x megacore split
    return _round_up(pl.cdiv(B, n_tiles), _SUBLANE)


def policy_network_forward(x, prepared, *, max_tb=8192):
    """x: (B, state_dim) f32.  prepared: output of prepare_params(), containing
    w1 (S,H), b1 (1,H), w2 (H,H), b2 (1,H), w3 (H,A), b3 (1,A), w3p (H,Ap),
    b3p (1,Ap).  Returns (B, A) f32 log-probabilities."""
    w1, b1 = prepared["w1"], prepared["b1"]
    w2, b2 = prepared["w2"], prepared["b2"]
    w3p, b3p = prepared["w3p"], prepared["b3p"]
    A = prepared["w3"].shape[1]

    B, S = x.shape
    H = w1.shape[1]
    Ap = w3p.shape[1]

    TB = _choose_batch_tile(B, max_tb)
    grid = (pl.cdiv(B, TB),)  # last tile may be partial; Pallas masks its store

    def stationary(a):
        nd = a.ndim
        return pl.BlockSpec(a.shape, lambda i: (0,) * nd)

    rows = grid[0] * TB  # rows the kernel actually processes (incl. padding)
    cost = pl.CostEstimate(
        flops=int(2 * rows * (S * H + H * H + H * Ap)),
        transcendentals=int(rows * (Ap + 1)),
        bytes_accessed=int(4 * (B * S + w1.size + b1.size + w2.size + b2.size
                                + w3p.size + b3p.size + B * A)),
    )

    out = pl.pallas_call(
        _policy_mlp_kernel,
        out_shape=jax.ShapeDtypeStruct((B, A), jnp.float32),
        grid=grid,
        in_specs=[
            pl.BlockSpec((TB, S), lambda i: (i, 0)),   # x: batch-tiled
            stationary(w1), stationary(b1),            # weights VMEM-resident
            stationary(w2), stationary(b2),
            stationary(w3p), stationary(b3p),
        ],
        out_specs=pl.BlockSpec((TB, A), lambda i: (i, 0)),  # narrow, unpadded
        compiler_params=pltpu.CompilerParams(
            dimension_semantics=("parallel",)),        # megacore split on v7x
        cost_estimate=cost,
    )(x, w1, b1, w2, b2, w3p, b3p)

    return out


def init_params(key, state_dim, hidden_dim, action_dim):
    """Deterministic init mimicking PyTorch Linear default (U[-1/sqrt(fan_in), +])."""
    ks = jax.random.split(key, 6)

    def lin(kw, kb, fan_in, fan_out):
        bound = 1.0 / jnp.sqrt(jnp.float32(fan_in))
        w = jax.random.uniform(kw, (fan_in, fan_out), jnp.float32, -bound, bound)
        b = jax.random.uniform(kb, (1, fan_out), jnp.float32, -bound, bound)
        return w, b

    w1, b1 = lin(ks[0], ks[1], state_dim, hidden_dim)
    w2, b2 = lin(ks[2], ks[3], hidden_dim, hidden_dim)
    w3, b3 = lin(ks[4], ks[5], hidden_dim, action_dim)
    return {"w1": w1, "b1": b1, "w2": w2, "b2": b2, "w3": w3, "b3": b3}


def _reference(x, p):
    h1 = jnp.maximum(x @ p["w1"] + p["b1"], 0.0)
    h2 = jnp.maximum(h1 @ p["w2"] + p["b2"], 0.0)
    logits = h2 @ p["w3"] + p["b3"]
    return jax.nn.log_softmax(logits, axis=-1)


if __name__ == "__main__":
    key = jax.random.PRNGKey(0)
    k_x, k_p, k_x2 = jax.random.split(key, 3)

    # CartPole-like shapes consistent with the module's forward.
    batch, state_dim, hidden_dim, action_dim = 8, 4, 32, 2

    x = jax.random.normal(k_x, (batch, state_dim), jnp.float32)
    params = init_params(k_p, state_dim, hidden_dim, action_dim)
    prepared = prepare_params(params)   # hoisted out of the per-step path

    out = jax.block_until_ready(policy_network_forward(x, prepared))
    ref = _reference(x, params)
    assert out.shape == (batch, action_dim)
    assert jnp.allclose(out, ref, atol=1e-5, rtol=1e-5)

    # Larger batch that is not a tile multiple: exercises the even 2-way tile
    # split (balanced across v7x TensorCores), the partial masked last tile,
    # and the narrow unpadded (B, A) output path.
    big_batch = 3000
    x_big = jax.random.normal(k_x2, (big_batch, state_dim), jnp.float32)
    out_big = jax.block_until_ready(policy_network_forward(x_big, prepared))
    ref_big = _reference(x_big, params)
    assert out_big.shape == (big_batch, action_dim)
    assert jnp.allclose(out_big, ref_big, atol=1e-5, rtol=1e-5)

    print("KERNEL_OK")
</pallas_src>

<mosaic_0001>
module attributes {stable_mosaic.version = 11 : i64} {
  func.func @_policy_mlp_kernel(%arg0: i32, %arg1: memref<8x4xf32, #tpu.memory_space<vmem>>, %arg2: memref<4x32xf32, #tpu.memory_space<vmem>>, %arg3: memref<1x32xf32, #tpu.memory_space<vmem>>, %arg4: memref<32x32xf32, #tpu.memory_space<vmem>>, %arg5: memref<1x32xf32, #tpu.memory_space<vmem>>, %arg6: memref<32x128xf32, #tpu.memory_space<vmem>>, %arg7: memref<1x128xf32, #tpu.memory_space<vmem>>, %arg8: memref<8x2xf32, #tpu.memory_space<vmem>>) attributes {dimension_semantics = [#tpu.dimension_semantics<parallel>], iteration_bounds = array<i64: 1>, scalar_prefetch = 0 : i64, scratch_operands = 0 : i64, tpu.core_type = #tpu.core_type<tc>, window_params = [{transform_indices = @transform_0, window_bounds = array<i64: 8, 4>}, {pipeline_mode = #tpu.pipeline_mode<synchronous>, transform_indices = @transform_1, window_bounds = array<i64: 4, 32>}, {pipeline_mode = #tpu.pipeline_mode<synchronous>, transform_indices = @transform_2, window_bounds = array<i64: 1, 32>}, {pipeline_mode = #tpu.pipeline_mode<synchronous>, transform_indices = @transform_3, window_bounds = array<i64: 32, 32>}, {pipeline_mode = #tpu.pipeline_mode<synchronous>, transform_indices = @transform_4, window_bounds = array<i64: 1, 32>}, {pipeline_mode = #tpu.pipeline_mode<synchronous>, transform_indices = @transform_5, window_bounds = array<i64: 32, 128>}, {pipeline_mode = #tpu.pipeline_mode<synchronous>, transform_indices = @transform_6, window_bounds = array<i64: 1, 128>}, {transform_indices = @transform_7, window_bounds = array<i64: 8, 2>}]} {
    %c0 = arith.constant 0 : index
    %c0_0 = arith.constant 0 : index
    %0 = vector.load %arg1[%c0, %c0_0] : memref<8x4xf32, #tpu.memory_space<vmem>>, vector<8x4xf32>
    %c0_1 = arith.constant 0 : index
    %c0_2 = arith.constant 0 : index
    %1 = vector.load %arg2[%c0_1, %c0_2] : memref<4x32xf32, #tpu.memory_space<vmem>>, vector<4x32xf32>
    %cst = arith.constant dense<0.000000e+00> : vector<8x32xf32>
    %2 = tpu.matmul %0, %1, %cst {dimension_numbers = #tpu.dot_dimension_numbers<[1], [0], [0], [1], [0, 0, 1, 1], [], []>} : vector<8x4xf32>, vector<4x32xf32>, vector<8x32xf32> -> vector<8x32xf32>
    %c0_3 = arith.constant 0 : index
    %c0_4 = arith.constant 0 : index
    %3 = vector.load %arg3[%c0_3, %c0_4] : memref<1x32xf32, #tpu.memory_space<vmem>>, vector<1x32xf32>
    %4 = vector.broadcast %3 : vector<1x32xf32> to vector<8x32xf32>
    %5 = arith.addf %2, %4 : vector<8x32xf32>
    %cst_5 = arith.constant 0.000000e+00 : f32
    %6 = vector.broadcast %cst_5 : f32 to vector<8x32xf32>
    %7 = arith.maximumf %5, %6 : vector<8x32xf32>
    %c0_6 = arith.constant 0 : index
    %c0_7 = arith.constant 0 : index
    %8 = vector.load %arg4[%c0_6, %c0_7] : memref<32x32xf32, #tpu.memory_space<vmem>>, vector<32x32xf32>
    %cst_8 = arith.constant dense<0.000000e+00> : vector<8x32xf32>
    %9 = tpu.matmul %7, %8, %cst_8 {dimension_numbers = #tpu.dot_dimension_numbers<[1], [0], [0], [1], [0, 0, 1, 1], [], []>} : vector<8x32xf32>, vector<32x32xf32>, vector<8x32xf32> -> vector<8x32xf32>
    %c0_9 = arith.constant 0 : index
    %c0_10 = arith.constant 0 : index
    %10 = vector.load %arg5[%c0_9, %c0_10] : memref<1x32xf32, #tpu.memory_space<vmem>>, vector<1x32xf32>
    %11 = vector.broadcast %10 : vector<1x32xf32> to vector<8x32xf32>
    %12 = arith.addf %9, %11 : vector<8x32xf32>
    %cst_11 = arith.constant 0.000000e+00 : f32
    %13 = vector.broadcast %cst_11 : f32 to vector<8x32xf32>
    %14 = arith.maximumf %12, %13 : vector<8x32xf32>
    %c0_12 = arith.constant 0 : index
    %c0_13 = arith.constant 0 : index
    %15 = vector.load %arg6[%c0_12, %c0_13] : memref<32x128xf32, #tpu.memory_space<vmem>>, vector<32x128xf32>
    %cst_14 = arith.constant dense<0.000000e+00> : vector<8x128xf32>
    %16 = tpu.matmul %14, %15, %cst_14 {dimension_numbers = #tpu.dot_dimension_numbers<[1], [0], [0], [1], [0, 0, 1, 1], [], []>} : vector<8x32xf32>, vector<32x128xf32>, vector<8x128xf32> -> vector<8x128xf32>
    %c0_15 = arith.constant 0 : index
    %c0_16 = arith.constant 0 : index
    %17 = vector.load %arg7[%c0_15, %c0_16] : memref<1x128xf32, #tpu.memory_space<vmem>>, vector<1x128xf32>
    %18 = vector.broadcast %17 : vector<1x128xf32> to vector<8x128xf32>
    %19 = arith.addf %16, %18 : vector<8x128xf32>
    %cst_17 = arith.constant dense<0xFF800000> : vector<8xf32>
    %20 = vector.multi_reduction <maximumf>, %19, %cst_17 [1] : vector<8x128xf32> to vector<8xf32>
    %21 = vector.shape_cast %20 : vector<8xf32> to vector<8x1xf32>
    %22 = vector.broadcast %21 : vector<8x1xf32> to vector<8x128xf32>
    %23 = arith.subf %19, %22 : vector<8x128xf32>
    %24 = math.exp %23 : vector<8x128xf32>
    %cst_18 = arith.constant dense<0.000000e+00> : vector<8xf32>
    %25 = vector.multi_reduction <add>, %24, %cst_18 [1] : vector<8x128xf32> to vector<8xf32>
    %26 = vector.shape_cast %25 : vector<8xf32> to vector<8x1xf32>
    %27 = math.log %26 : vector<8x1xf32>
    %28 = vector.broadcast %27 : vector<8x1xf32> to vector<8x128xf32>
    %29 = arith.subf %23, %28 : vector<8x128xf32>
    %30 = vector.extract_strided_slice %29 {offsets = [0, 0], sizes = [8, 2], strides = [1, 1]} : vector<8x128xf32> to vector<8x2xf32>
    %c0_19 = arith.constant 0 : index
    %c0_20 = arith.constant 0 : index
    %31 = vector.load %arg8[%c0_19, %c0_20] : memref<8x2xf32, #tpu.memory_space<vmem>>, vector<8x2xf32>
    tpu.vector_store %arg8[%c0_19, %c0_20], %30 {strides = array<i32>} : memref<8x2xf32, #tpu.memory_space<vmem>>, vector<8x2xf32>,
    return
  }
  func.func @transform_0(%arg0: i32) -> (i32, i32) {
    %c0_i32 = arith.constant 0 : i32
    %c0_i32_0 = arith.constant 0 : i32
    return %arg0, %c0_i32 : i32, i32
  }
  func.func @transform_1(%arg0: i32) -> (i32, i32) {
    %c0_i32 = arith.constant 0 : i32
    %c0_i32_0 = arith.constant 0 : i32
    %c0_i32_1 = arith.constant 0 : i32
    return %c0_i32, %c0_i32_0 : i32, i32
  }
  func.func @transform_2(%arg0: i32) -> (i32, i32) {
    %c0_i32 = arith.constant 0 : i32
    %c0_i32_0 = arith.constant 0 : i32
    %c0_i32_1 = arith.constant 0 : i32
    return %c0_i32, %c0_i32_0 : i32, i32
  }
  func.func @transform_3(%arg0: i32) -> (i32, i32) {
    %c0_i32 = arith.constant 0 : i32
    %c0_i32_0 = arith.constant 0 : i32
    %c0_i32_1 = arith.constant 0 : i32
    return %c0_i32, %c0_i32_0 : i32, i32
  }
  func.func @transform_4(%arg0: i32) -> (i32, i32) {
    %c0_i32 = arith.constant 0 : i32
    %c0_i32_0 = arith.constant 0 : i32
    %c0_i32_1 = arith.constant 0 : i32
    return %c0_i32, %c0_i32_0 : i32, i32
  }
  func.func @transform_5(%arg0: i32) -> (i32, i32) {
    %c0_i32 = arith.constant 0 : i32
    %c0_i32_0 = arith.constant 0 : i32
    %c0_i32_1 = arith.constant 0 : i32
    return %c0_i32, %c0_i32_0 : i32, i32
  }
  func.func @transform_6(%arg0: i32) -> (i32, i32) {
    %c0_i32 = arith.constant 0 : i32
    %c0_i32_0 = arith.constant 0 : i32
    %c0_i32_1 = arith.constant 0 : i32
    return %c0_i32, %c0_i32_0 : i32, i32
  }
  func.func @transform_7(%arg0: i32) -> (i32, i32) {
    %c0_i32 = arith.constant 0 : i32
    %c0_i32_0 = arith.constant 0 : i32
    return %arg0, %c0_i32 : i32, i32
  }
}

</mosaic_0001>

<llo_original>
// kernel: tpu_custom_call.1
$region0: #{tpu_custom_call.1}
  #allocation0 [shape = 'u32[]', space=smem, size = 0x4, offset = 0x4, fixed_abs, tag = 'smem constant byte address 0x4 - core index']
  #allocation1 [shape = 'u32[144,128]{1,0:T(1,128)}', space=vmem, size = 0x12000, scoped, tag = 'internal scratch']
  %s0 = inlined_call_operand.vmem [shape: f32[8,4], index: 0, kind: input, shape index: {}]
  %s1 = inlined_call_operand.vmem [shape: f32[4,32], index: 1, kind: input, shape index: {}]
  %s2 = inlined_call_operand.vmem [shape: f32[1,32], index: 2, kind: input, shape index: {}]
  %s3 = inlined_call_operand.hbm [shape: f32[32,32], index: 3, kind: input, shape index: {}]
  %s4 = inlined_call_operand.vmem [shape: f32[1,32], index: 4, kind: input, shape index: {}]
  %s5 = inlined_call_operand.hbm [shape: f32[32,128], index: 5, kind: input, shape index: {}]
  %s6 = inlined_call_operand.vmem [shape: f32[1,128], index: 6, kind: input, shape index: {}]
  %s7 = inlined_call_operand.vmem [shape: f32[8,2], index: 7, kind: output, shape index: {}]
  %s8 = sld [smem:[#allocation0]]
  $region46: #{tpu_custom_call.1} parent=0
    _
  %s10 = ssub.s32 1, %s8
  %s11 = scalar_select 0, %s10, %s8
  $region1: #{tpu_custom_call.1} parent=0
    #allocation2 [shape = 'u8[16384]{0}', space=vmem, size = 0x4000, scoped, tag = 'input window, operand 3, single buffered']
    #allocation3 [shape = 's32[1]{0}', space=sflag, size = 0x4, scoped, tag = 'scoped memory for tpu_custom_call.1']
    #allocation4 [shape = 'u8[16384]{0}', space=vmem, size = 0x4000, scoped, tag = 'input window, operand 5, single buffered']
    #allocation5 [shape = 's32[1]{0}', space=sflag, size = 0x4, scoped, tag = 'scoped memory for tpu_custom_call.1']
    %12 = vsyncpa [#allocation3], 0
    %13 = vsyncpa [#allocation5], 0
    // Predicated region
    $region2: #{tpu_custom_call.1} parent=1 // pred_check
      _
    $region3: #{tpu_custom_call.1} parent=1 // pred_check_branch
      %15 = sbr.rel (0) target = $region5
    $region4: #{tpu_custom_call.1} parent=1 // pred_region
      _
    $region5: #{tpu_custom_call.1} parent=1 // pred_fallthru
      _
    // Predicated region
    $region6: #{tpu_custom_call.1} parent=1 // pred_check
      _
    $region7: #{tpu_custom_call.1} parent=1 // pred_check_branch
      %17 = sbr.rel (0) target = $region9
    $region8: #{tpu_custom_call.1} parent=1 // pred_region
      _
    $region9: #{tpu_custom_call.1} parent=1 // pred_fallthru
      _
    // Predicated region
    $region10: #{tpu_custom_call.1} parent=1 // pred_check
      _
    $region11: #{tpu_custom_call.1} parent=1 // pred_check_branch
      %19 = sbr.rel (0) target = $region13
    $region12: #{tpu_custom_call.1} parent=1 // pred_region
      _
    $region13: #{tpu_custom_call.1} parent=1 // pred_fallthru
      _
    // Predicated region
    $region14: #{tpu_custom_call.1} parent=1 // pred_check
      _
    $region15: #{tpu_custom_call.1} parent=1 // pred_check_branch
      %21 = sbr.rel (0) target = $region17
    $region16: #{tpu_custom_call.1} parent=1 // pred_region
      %s23 = ssub.s32 512, 512
      %24 = vsyncadd [#allocation3], %s23
      %s25 = sshll.u32 [#allocation2], 4
      %s26 = int_to_ptr.vmem [resolvable:$true] %s25
      %31 = dma.hbm_to_vmem [thread:$0]  %s3, 512, %s26, [#allocation3], 128, 128, 8
    $region17: #{tpu_custom_call.1} parent=1 // pred_fallthru
      _
    // Predicated region
    $region18: #{tpu_custom_call.1} parent=1 // pred_check
      _
    $region19: #{tpu_custom_call.1} parent=1 // pred_check_branch
      %33 = sbr.rel (0) target = $region21
    $region20: #{tpu_custom_call.1} parent=1 // pred_region
      _
    $region21: #{tpu_custom_call.1} parent=1 // pred_fallthru
      _
    // Predicated region
    $region22: #{tpu_custom_call.1} parent=1 // pred_check
      _
    $region23: #{tpu_custom_call.1} parent=1 // pred_check_branch
      %35 = sbr.rel (0) target = $region25
    $region24: #{tpu_custom_call.1} parent=1 // pred_region
      %s37 = ssub.s32 512, 512
      %38 = vsyncadd [#allocation5], %s37
      %s39 = sshll.u32 [#allocation4], 4
      %s40 = int_to_ptr.vmem [resolvable:$true] %s39
      %45 = dma.hbm_to_vmem [thread:$0]  %s5, 512, %s40, [#allocation5], 128, 128, 8
    $region25: #{tpu_custom_call.1} parent=1 // pred_fallthru
      _
    // Predicated region
    $region26: #{tpu_custom_call.1} parent=1 // pred_check
      _
    $region27: #{tpu_custom_call.1} parent=1 // pred_check_branch
      %47 = sbr.rel (0) target = $region29
    $region28: #{tpu_custom_call.1} parent=1 // pred_region
      _
    $region29: #{tpu_custom_call.1} parent=1 // pred_fallthru
      _
    // Predicated region
    $region30: #{tpu_custom_call.1} parent=1 // pred_check
      _
    $region31: #{tpu_custom_call.1} parent=1 // pred_check_branch
      %49 = sbr.rel (0) target = $region33
    $region32: #{tpu_custom_call.1} parent=1 // pred_region
      %50 = dma.done [#allocation3], 512
    $region33: #{tpu_custom_call.1} parent=1 // pred_fallthru
      _
    // Predicated region
    $region34: #{tpu_custom_call.1} parent=1 // pred_check
      _
    $region35: #{tpu_custom_call.1} parent=1 // pred_check_branch
      %52 = sbr.rel (0) target = $region37
    $region36: #{tpu_custom_call.1} parent=1 // pred_region
      %53 = dma.done [#allocation5], 512
    $region37: #{tpu_custom_call.1} parent=1 // pred_fallthru
      _
    %v54 = vld [vmem:[%s0] sm:$0xff]
    %v55 = vld [vmem:[%s1] sm:$0xf]
    %v56 = vld [vmem:[%s2] sm:$0x1]
    %v58 = vlaneseq
    %v59 = vshrl.u32 %v58, 7
    %v60 = vsub.s32 0, %v59
    %v61 = vrot.slane %v56, %v60
    %vm63 = vcmask 31744
    %v65 = vsel %vm63, %v54, 0
    %vm67 = vcmask 1043456
    %v69 = vsel %vm67, %v55, 0
    %71 = vmatprep.subr.mxu0 0.0
    %72 = vmatpush1.msra.mxu0 %v69
    %73 = vmatprep.subr.mxu0 0.0
    %74 = vmatpush1.msra.mxu0 0.0
    %75 = vmatprep.subr.mxu0 0.0
    %76 = vmatpush1.msra.mxu0 0.0
    %77 = vmatprep.subr.mxu0 0.0
    %78 = vmatpush1.msra.mxu0 0.0
    %79 = vmatprep.subr.mxu0 0.0
    %80 = vmatpush1.msra.mxu0 0.0
    %81 = vmatprep.subr.mxu0 0.0
    %82 = vmatpush1.msra.mxu0 0.0
    %83 = vmatprep.subr.mxu0 0.0
    %84 = vmatpush1.msra.mxu0 0.0
    %85 = vmatprep.subr.mxu0 0.0
    %86 = vmatpush1.msra.mxu0 0.0
    %87 = vmatprep.subr.mxu0 0.0
    %88 = vmatpush1.msra.mxu0 0.0
    %89 = vmatprep.subr.mxu0 0.0
    %90 = vmatpush1.msra.mxu0 0.0
    %91 = vmatprep.subr.mxu0 0.0
    %92 = vmatpush1.msra.mxu0 0.0
    %93 = vmatprep.subr.mxu0 0.0
    %94 = vmatpush1.msra.mxu0 0.0
    %95 = vmatprep.subr.mxu0 0.0
    %96 = vmatpush1.msra.mxu0 0.0
    %97 = vmatprep.subr.mxu0 0.0
    %98 = vmatpush1.msra.mxu0 0.0
    %99 = vmatprep.subr.mxu0 0.0
    %100 = vmatpush1.msra.mxu0 0.0
    %101 = vmatprep.subr.mxu0 0.0
    %102 = vmatpush1.msra.mxu0 0.0
    %103 = vmatprep.subr.mxu0 0.0
    %104 = vmatpush1.msra.mxu0 0.0
    %105 = vmatprep.subr.mxu0 0.0
    %106 = vmatpush1.msra.mxu0 0.0
    %107 = vmatprep.subr.mxu0 0.0
    %108 = vmatpush1.msra.mxu0 0.0
    %109 = vmatprep.subr.mxu0 0.0
    %110 = vmatpush1.msra.mxu0 0.0
    %111 = vmatprep.subr.mxu0 0.0
    %112 = vmatpush1.msra.mxu0 0.0
    %113 = vmatprep.subr.mxu0 0.0
    %114 = vmatpush1.msra.mxu0 0.0
    %115 = vmatprep.subr.mxu0 0.0
    %116 = vmatpush1.msra.mxu0 0.0
    %117 = vmatprep.subr.mxu0 0.0
    %118 = vmatpush1.msra.mxu0 0.0
    %119 = vmatprep.subr.mxu0 0.0
    %120 = vmatpush1.msra.mxu0 0.0
    %121 = vmatprep.subr.mxu0 0.0
    %122 = vmatpush1.msra.mxu0 0.0
    %123 = vmatprep.subr.mxu0 0.0
    %124 = vmatpush1.msra.mxu0 0.0
    %125 = vmatprep.subr.mxu0 0.0
    %126 = vmatpush1.msra.mxu0 0.0
    %127 = vmatprep.subr.mxu0 0.0
    %128 = vmatpush1.msra.mxu0 0.0
    %129 = vmatprep.subr.mxu0 0.0
    %130 = vmatpush1.msra.mxu0 0.0
    %131 = vmatprep.subr.mxu0 0.0
    %132 = vmatpush1.msra.mxu0 0.0
    %133 = vmatprep.subr.mxu0 0.0
    %134 = vmatpush1.msra.mxu0 0.0
    %135 = vmatprep.mubr.f32.mxu0 0.0
    %136 = vmatmul.mubr.f32.gmra.mrb[0].mxu0 %v65
    %v137 = vpop.f32.mrb[0].mxu0
    %v138 = vadd.f32 %v61, %v137
    %v139 = vpop.f32.mrb[0].mxu0
    %140 = vdwg.mxu0
    %v141 = vmax.f32 %v138, 0.0
    %v142 = vld [vmem:[#allocation2] sm:$0xff]
    %v143 = vld [vmem:[#allocation2 + $0x8] sm:$0xff]
    %v144 = vld [vmem:[#allocation2 + $0x10] sm:$0xff]
    %v145 = vld [vmem:[#allocation2 + $0x18] sm:$0xff]
    %v146 = vld [vmem:[%s4] sm:$0x1]
    %v148 = vlaneseq
    %v149 = vshrl.u32 %v148, 7
    %v150 = vsub.s32 0, %v149
    %v151 = vrot.slane %v146, %v150
    %vm153 = vcmask 261120
    %v155 = vsel %vm153, %v141, 0
    %157 = vmatprep.subr.mxu0 0.0
    %158 = vmatpush1.msra.mxu0 %v142
    %159 = vmatprep.subr.mxu0 0.0
    %160 = vmatpush1.msra.mxu0 %v143
    %161 = vmatprep.subr.mxu0 0.0
    %162 = vmatpush1.msra.mxu0 %v144
    %163 = vmatprep.subr.mxu0 0.0
    %164 = vmatpush1.msra.mxu0 %v145
    %165 = vmatprep.subr.mxu0 0.0
    %166 = vmatpush1.msra.mxu0 0.0
    %167 = vmatprep.subr.mxu0 0.0
    %168 = vmatpush1.msra.mxu0 0.0
    %169 = vmatprep.subr.mxu0 0.0
    %170 = vmatpush1.msra.mxu0 0.0
    %171 = vmatprep.subr.mxu0 0.0
    %172 = vmatpush1.msra.mxu0 0.0
    %173 = vmatprep.subr.mxu0 0.0
    %174 = vmatpush1.msra.mxu0 0.0
    %175 = vmatprep.subr.mxu0 0.0
    %176 = vmatpush1.msra.mxu0 0.0
    %177 = vmatprep.subr.mxu0 0.0
    %178 = vmatpush1.msra.mxu0 0.0
    %179 = vmatprep.subr.mxu0 0.0
    %180 = vmatpush1.msra.mxu0 0.0
    %181 = vmatprep.subr.mxu0 0.0
    %182 = vmatpush1.msra.mxu0 0.0
    %183 = vmatprep.subr.mxu0 0.0
    %184 = vmatpush1.msra.mxu0 0.0
    %185 = vmatprep.subr.mxu0 0.0
    %186 = vmatpush1.msra.mxu0 0.0
    %187 = vmatprep.subr.mxu0 0.0
    %188 = vmatpush1.msra.mxu0 0.0
    %189 = vmatprep.subr.mxu0 0.0
    %190 = vmatpush1.msra.mxu0 0.0
    %191 = vmatprep.subr.mxu0 0.0
    %192 = vmatpush1.msra.mxu0 0.0
    %193 = vmatprep.subr.mxu0 0.0
    %194 = vmatpush1.msra.mxu0 0.0
    %195 = vmatprep.subr.mxu0 0.0
    %196 = vmatpush1.msra.mxu0 0.0
    %197 = vmatprep.subr.mxu0 0.0
    %198 = vmatpush1.msra.mxu0 0.0
    %199 = vmatprep.subr.mxu0 0.0
    %200 = vmatpush1.msra.mxu0 0.0
    %201 = vmatprep.subr.mxu0 0.0
    %202 = vmatpush1.msra.mxu0 0.0
    %203 = vmatprep.subr.mxu0 0.0
    %204 = vmatpush1.msra.mxu0 0.0
    %205 = vmatprep.subr.mxu0 0.0
    %206 = vmatpush1.msra.mxu0 0.0
    %207 = vmatprep.subr.mxu0 0.0
    %208 = vmatpush1.msra.mxu0 0.0
    %209 = vmatprep.subr.mxu0 0.0
    %210 = vmatpush1.msra.mxu0 0.0
    %211 = vmatprep.subr.mxu0 0.0
    %212 = vmatpush1.msra.mxu0 0.0
    %213 = vmatprep.subr.mxu0 0.0
    %214 = vmatpush1.msra.mxu0 0.0
    %215 = vmatprep.subr.mxu0 0.0
    %216 = vmatpush1.msra.mxu0 0.0
    %217 = vmatprep.subr.mxu0 0.0
    %218 = vmatpush1.msra.mxu0 0.0
    %219 = vmatprep.subr.mxu0 0.0
    %220 = vmatpush1.msra.mxu0 0.0
    %221 = vmatprep.mubr.f32.mxu0 0.0
    %222 = vmatmul.mubr.f32.gmra.mrb[0].mxu0 %v155
    %v223 = vpop.f32.mrb[0].mxu0
    %v224 = vadd.f32 %v151, %v223
    %v225 = vpop.f32.mrb[0].mxu0
    %226 = vdwg.mxu0
    %v227 = vmax.f32 %v224, 0.0
    %v228 = vld [vmem:[#allocation4] sm:$0xff]
    %v229 = vld [vmem:[#allocation4 + $0x8] sm:$0xff]
    %v230 = vld [vmem:[#allocation4 + $0x10] sm:$0xff]
    %v231 = vld [vmem:[#allocation4 + $0x18] sm:$0xff]
    %v232 = vld [vmem:[%s6] sm:$0x1]
    %v234 = vlaneseq
    %v235 = vshrl.u32 %v234, 7
    %v236 = vsub.s32 0, %v235
    %v237 = vrot.slane %v232, %v236
    %v240 = vsel %vm153, %v227, 0
    %242 = vmatprep.subr.mxu0 0.0
    %243 = vmatpush1.msra.mxu0 %v228
    %244 = vmatprep.subr.mxu0 0.0
    %245 = vmatpush1.msra.mxu0 %v229
    %246 = vmatprep.subr.mxu0 0.0
    %247 = vmatpush1.msra.mxu0 %v230
    %248 = vmatprep.subr.mxu0 0.0
    %249 = vmatpush1.msra.mxu0 %v231
    %250 = vmatprep.subr.mxu0 0.0
    %251 = vmatpush1.msra.mxu0 0.0
    %252 = vmatprep.subr.mxu0 0.0
    %253 = vmatpush1.msra.mxu0 0.0
    %254 = vmatprep.subr.mxu0 0.0
    %255 = vmatpush1.msra.mxu0 0.0
    %256 = vmatprep.subr.mxu0 0.0
    %257 = vmatpush1.msra.mxu0 0.0
    %258 = vmatprep.subr.mxu0 0.0
    %259 = vmatpush1.msra.mxu0 0.0
    %260 = vmatprep.subr.mxu0 0.0
    %261 = vmatpush1.msra.mxu0 0.0
    %262 = vmatprep.subr.mxu0 0.0
    %263 = vmatpush1.msra.mxu0 0.0
    %264 = vmatprep.subr.mxu0 0.0
    %265 = vmatpush1.msra.mxu0 0.0
    %266 = vmatprep.subr.mxu0 0.0
    %267 = vmatpush1.msra.mxu0 0.0
    %268 = vmatprep.subr.mxu0 0.0
    %269 = vmatpush1.msra.mxu0 0.0
    %270 = vmatprep.subr.mxu0 0.0
    %271 = vmatpush1.msra.mxu0 0.0
    %272 = vmatprep.subr.mxu0 0.0
    %273 = vmatpush1.msra.mxu0 0.0
    %274 = vmatprep.subr.mxu0 0.0
    %275 = vmatpush1.msra.mxu0 0.0
    %276 = vmatprep.subr.mxu0 0.0
    %277 = vmatpush1.msra.mxu0 0.0
    %278 = vmatprep.subr.mxu0 0.0
    %279 = vmatpush1.msra.mxu0 0.0
    %280 = vmatprep.subr.mxu0 0.0
    %281 = vmatpush1.msra.mxu0 0.0
    %282 = vmatprep.subr.mxu0 0.0
    %283 = vmatpush1.msra.mxu0 0.0
    %284 = vmatprep.subr.mxu0 0.0
    %285 = vmatpush1.msra.mxu0 0.0
    %286 = vmatprep.subr.mxu0 0.0
    %287 = vmatpush1.msra.mxu0 0.0
    %288 = vmatprep.subr.mxu0 0.0
    %289 = vmatpush1.msra.mxu0 0.0
    %290 = vmatprep.subr.mxu0 0.0
    %291 = vmatpush1.msra.mxu0 0.0
    %292 = vmatprep.subr.mxu0 0.0
    %293 = vmatpush1.msra.mxu0 0.0
    %294 = vmatprep.subr.mxu0 0.0
    %295 = vmatpush1.msra.mxu0 0.0
    %296 = vmatprep.subr.mxu0 0.0
    %297 = vmatpush1.msra.mxu0 0.0
    %298 = vmatprep.subr.mxu0 0.0
    %299 = vmatpush1.msra.mxu0 0.0
    %300 = vmatprep.subr.mxu0 0.0
    %301 = vmatpush1.msra.mxu0 0.0
    %302 = vmatprep.subr.mxu0 0.0
    %303 = vmatpush1.msra.mxu0 0.0
    %304 = vmatprep.subr.mxu0 0.0
    %305 = vmatpush1.msra.mxu0 0.0
    %306 = vmatprep.mubr.f32.mxu0 0.0
    %307 = vmatmul.mubr.f32.gmra.mrb[0].mxu0 %v240
    %v308 = vpop.f32.mrb[0].mxu0
    %v309 = vadd.f32 %v237, %v308
    %v310 = vpop.f32.mrb[0].mxu0
    %311 = vdwg.mxu0
    %312 = vmax.xlane.f32.xlu0 %v309
    %v313 = vpop.xlane.xlu0 %312
    %v314 = vsub.f32 %v309, %v313
    %v315 = vmul.f32 %v314, 1.442695
    %v316 = vpow.pop %v315
    %317 = vadd.xlane.f32.xlu0 %v316
    %v318 = vpop.xlane.xlu0 %317
    %v319 = vlog2.pop %v318
    %v320 = vmul.f32 %v319, 0.6931472
    %v321 = vsub.f32 %v314, %v320
    %vm322 = vcmask 15360
    %323 = vst.msk [vmem:[%s7] sm:$0xff] %vm322, %v321
    // Predicated region
    $region38: #{tpu_custom_call.1} parent=1 // pred_check
      _
    $region39: #{tpu_custom_call.1} parent=1 // pred_check_branch
      %325 = sbr.rel (0) target = $region41
    $region40: #{tpu_custom_call.1} parent=1 // pred_region
      _
    $region41: #{tpu_custom_call.1} parent=1 // pred_fallthru
      _
    // Predicated region
    $region42: #{tpu_custom_call.1} parent=1 // pred_check
      _
    $region43: #{tpu_custom_call.1} parent=1 // pred_check_branch
      %327 = sbr.rel (0) target = $region45
    $region44: #{tpu_custom_call.1} parent=1 // pred_region
      _
    $region45: #{tpu_custom_call.1} parent=1 // pred_fallthru
      _
    %328 = vsyncpa [#allocation3], 1
    %329 = vsyncpa [#allocation5], 1

</llo_original>
